<compile_context>
chip_gen: v7x
topology: tpu7x:2x2x1
jax: 0.10.0
libtpu: 0.0.40
codegen_flags: <defaults>
</compile_context>

<pallas_src>
import numpy as np

import jax
import jax.numpy as jnp
from jax import lax
from jax.experimental import pallas as pl
from jax.experimental.pallas import tpu as pltpu

_TARGET_BLOCK_BYTES = 2 << 20        # ~2 MiB per operand block (per pipeline buffer)
_VMEM_LIMIT_BYTES = 48 << 20         # explicit scoped-VMEM cap (fits v7x's 64 MiB physical)
_GOLDEN = 0x9E3779B9                 # seed mixing constant
_M1 = 0x7FEB352D                     # lowbias32 multipliers
_M2 = 0x846CA68B


# ---------------------------------------------------------------------------
# Layout / tiling helpers
# ---------------------------------------------------------------------------
def _choose_layout(total):
    """Largest lane-dense column count in {1024,512,256,128} dividing `total`;
    falls back to 128 for ragged sizes (the mask path absorbs the <=127 overshoot)."""
    for cols in (1024, 512, 256, 128):
        if total % cols == 0:
            return cols, cols.bit_length() - 1
    return 128, 7


def _pick_block_rows(rows, cols):
    """~2 MiB blocks; keep >=2 grid steps (both v7x TCs busy) when rows permit."""
    br = max(8, _TARGET_BLOCK_BYTES // (cols * 4))
    if rows >= 16:
        br = min(br, max(8, (rows // 2) // 8 * 8))
    br = min(br, rows)
    if rows >= 8:
        br = max(8, (br // 8) * 8)        # (8,128) sublane constraint
    return br


def _compiler_params():
    return pltpu.CompilerParams(
        dimension_semantics=("parallel",),
        vmem_limit_bytes=_VMEM_LIMIT_BYTES,
    )


def _seed_array(seed):
    return jnp.asarray([int(seed) & 0x7FFFFFFF], dtype=jnp.int32)


def _thresholds(p):
    t32 = np.uint32(min(int(round(p * 2.0 ** 32)), 0xFFFFFFFF))
    t16 = np.uint32(min(int(round(p * 2.0 ** 16)), 0xFFFF))
    return t32, t16


# ---------------------------------------------------------------------------
# In-kernel hash (VPU-only integer ops)
# ---------------------------------------------------------------------------
def _hash_u32(h):
    """lowbias32: invertible 32-bit integer hash with good avalanche."""
    h = (h ^ (h >> 16)) * jnp.uint32(_M1)
    h = (h ^ (h >> 15)) * jnp.uint32(_M2)
    return h ^ (h >> 16)


def _tile_hash(seed_ref, shape, log2_cols, block_rows):
    """Hash of the global flat element index of every slot in the current tile.

    Per-tile constants (seed mix, row base) are computed on the scalar unit and
    broadcast once; the `* cols` is a shift since cols is a power of two.
    """
    smix = seed_ref[0].astype(jnp.uint32) * jnp.uint32(_GOLDEN)        # scalar
    base = pl.program_id(0) * (block_rows << log2_cols)                # scalar int32
    row = lax.broadcasted_iota(jnp.int32, shape, 0)
    col = lax.broadcasted_iota(jnp.int32, shape, 1)
    idx = (((row << log2_cols) | col) + base).astype(jnp.uint32)       # global flat index
    return _hash_u32(idx ^ smix)


# ---------------------------------------------------------------------------
# Kernel factories
# ---------------------------------------------------------------------------
def _make_apply_kernel(p, split, log2_cols, block_rows):
    """Planar fused kernel: reads xr/xi blocks, writes dropped-out yr/yi blocks."""
    inv_keep = np.float32(1.0 / (1.0 - p))
    t32, t16 = _thresholds(p)

    def kernel(seed_ref, xr_ref, xi_ref, yr_ref, yi_ref):
        h = _tile_hash(seed_ref, xr_ref.shape, log2_cols, block_rows)
        scale = jnp.float32(inv_keep)
        zero = jnp.float32(0.0)
        xr = xr_ref[...]
        xi = xi_ref[...]
        if split:
            keep_r = (h & jnp.uint32(0xFFFF)) >= t16
            keep_i = (h >> jnp.uint32(16)) >= t16
            yr_ref[...] = jnp.where(keep_r, xr * scale, zero)
            yi_ref[...] = jnp.where(keep_i, xi * scale, zero)
        else:
            keep = h >= t32
            yr_ref[...] = jnp.where(keep, xr * scale, zero)
            yi_ref[...] = jnp.where(keep, xi * scale, zero)

    return kernel


def _make_mask_kernel(p, split, log2_cols, block_rows):
    """Mask-only kernel: writes f32 masks in {0, 1/(1-p)}; the multiply is left to XLA."""
    inv_keep = np.float32(1.0 / (1.0 - p))
    t32, t16 = _thresholds(p)

    def kernel(seed_ref, *out_refs):
        h = _tile_hash(seed_ref, out_refs[0].shape, log2_cols, block_rows)
        scale = jnp.float32(inv_keep)
        zero = jnp.float32(0.0)
        if split:
            mr_ref, mi_ref = out_refs
            mr_ref[...] = jnp.where((h & jnp.uint32(0xFFFF)) >= t16, scale, zero)
            mi_ref[...] = jnp.where((h >> jnp.uint32(16)) >= t16, scale, zero)
        else:
            (m_ref,) = out_refs
            m_ref[...] = jnp.where(h >= t32, scale, zero)

    return kernel


# ---------------------------------------------------------------------------
# Mask generation (works for any size, never pads/copies the data)
# ---------------------------------------------------------------------------
def _dropout_masks(total, p, seed, split):
    """Run the mask-only Pallas kernel; returns flat float32 mask(s) of length >= total."""
    assert 0 < total < 2 ** 31, "flat element count must fit in int32"
    cols, log2_cols = _choose_layout(total)
    rows = pl.cdiv(total, cols)                 # ragged sizes over-generate < cols elems
    block_rows = _pick_block_rows(rows, cols)
    grid = (pl.cdiv(rows, block_rows),)

    blk = pl.BlockSpec((block_rows, cols), lambda i, seed_ref: (i, 0))
    out_sds = jax.ShapeDtypeStruct((rows, cols), jnp.float32)
    kernel = _make_mask_kernel(p, split, log2_cols, block_rows)

    grid_spec = pltpu.PrefetchScalarGridSpec(
        num_scalar_prefetch=1,
        grid=grid,
        in_specs=[],
        out_specs=(blk, blk) if split else blk,
    )
    masks = pl.pallas_call(
        kernel,
        grid_spec=grid_spec,
        out_shape=(out_sds, out_sds) if split else out_sds,
        compiler_params=_compiler_params(),
    )(_seed_array(seed))

    if split:
        mr, mi = masks
        return mr.reshape(-1), mi.reshape(-1)
    return masks.reshape(-1)


# ---------------------------------------------------------------------------
# Public entry points
# ---------------------------------------------------------------------------
def complex_dropout(x, dropout_rate, *, seed=0, split=False, training=True):
    """complexDropout.forward for a complex64 array of any shape.

    The Pallas kernel only produces the dropout mask(s); the mask * x multiply is an
    ordinary XLA elementwise op so it fuses with neighbouring complex ops under jit
    (no real/imag planes are materialised around the kernel, no padding of x ever).
    """
    p = float(dropout_rate)
    if (not training) or p == 0.0:
        return x                                 # nn.Dropout is identity in eval / p=0
    if p >= 1.0:
        return jnp.zeros_like(x)

    shape = x.shape
    total = int(np.prod(shape)) if len(shape) else 1

    if split:
        mr_f, mi_f = _dropout_masks(total, p, seed, True)
        mr = mr_f[:total].reshape(shape)
        mi = mi_f[:total].reshape(shape)
        # Elementwise; real/imag extraction + recombine fuse with the multiply in XLA.
        return lax.complex(jnp.real(x) * mr, jnp.imag(x) * mi)

    m_f = _dropout_masks(total, p, seed, False)
    m = m_f[:total].reshape(shape)
    return x * m                                  # exactly torch's rdrop(ones_like(x.real)) * x


def complex_dropout_planar(xr, xi, dropout_rate, *, seed=0, split=False, training=True):
    """Fast path: dropout applied directly to planar float32 (real, imag) planes.

    Use when the surrounding ModeFormer block keeps activations planar; the Pallas
    kernel reads and writes the planes in place (input_output_aliases), 16 B/elem.
    Produces bit-identical masks to complex_dropout for the same seed.
    """
    p = float(dropout_rate)
    if (not training) or p == 0.0:
        return xr, xi
    if p >= 1.0:
        return jnp.zeros_like(xr), jnp.zeros_like(xi)

    assert xr.shape == xi.shape, "real and imaginary planes must have the same shape"
    shape = xr.shape
    total = int(np.prod(shape)) if len(shape) else 1
    assert 0 < total < 2 ** 31, "flat element count must fit in int32"
    xr = xr.astype(jnp.float32)
    xi = xi.astype(jnp.float32)

    cols, log2_cols = _choose_layout(total)
    if total % cols != 0:
        # Ragged size: never pad/copy the planes — reuse the mask kernel and let XLA
        # fuse the (<cols) overshoot slice and the multiplies into one pass.
        if split:
            mr_f, mi_f = _dropout_masks(total, p, seed, True)
            return xr * mr_f[:total].reshape(shape), xi * mi_f[:total].reshape(shape)
        m_f = _dropout_masks(total, p, seed, False)
        m = m_f[:total].reshape(shape)
        return xr * m, xi * m

    rows = total // cols
    block_rows = _pick_block_rows(rows, cols)
    grid = (pl.cdiv(rows, block_rows),)
    xr2 = xr.reshape(rows, cols)                 # free: contiguous row-major reshape
    xi2 = xi.reshape(rows, cols)

    blk = pl.BlockSpec((block_rows, cols), lambda i, seed_ref: (i, 0))
    out_sds = jax.ShapeDtypeStruct((rows, cols), jnp.float32)
    kernel = _make_apply_kernel(p, split, log2_cols, block_rows)

    grid_spec = pltpu.PrefetchScalarGridSpec(
        num_scalar_prefetch=1,
        grid=grid,
        in_specs=[blk, blk],
        out_specs=(blk, blk),
    )
    yr2, yi2 = pl.pallas_call(
        kernel,
        grid_spec=grid_spec,
        out_shape=(out_sds, out_sds),
        input_output_aliases={1: 0, 2: 1},       # xr2 -> yr, xi2 -> yi (in-place in HBM)
        compiler_params=_compiler_params(),
    )(_seed_array(seed), xr2, xi2)
    return yr2.reshape(shape), yi2.reshape(shape)


# ---------------------------------------------------------------------------
# Demo / correctness checks
# ---------------------------------------------------------------------------
if __name__ == "__main__":
    key = jax.random.PRNGKey(0)
    k_r, k_i = jax.random.split(key)

    B, C, H, W = 2, 4, 16, 16
    x_real = jax.random.normal(k_r, (B, C, H, W), dtype=jnp.float32)
    x_imag = jax.random.normal(k_i, (B, C, H, W), dtype=jnp.float32)
    x = lax.complex(x_real, x_imag)              # complex64, NCHW

    p = 0.3
    scale = 1.0 / (1.0 - p)
    seed = 1234

    drop_shared = jax.jit(lambda v: complex_dropout(v, p, seed=seed, split=False))
    drop_split = jax.jit(lambda v: complex_dropout(v, p, seed=seed, split=True))
    drop_planar = jax.jit(lambda r, i: complex_dropout_planar(r, i, p, seed=seed, split=False))

    y_shared = jax.block_until_ready(drop_shared(x))
    y_split = jax.block_until_ready(drop_split(x))
    yr_pl, yi_pl = jax.block_until_ready(drop_planar(x_real, x_imag))

    x_np = np.asarray(x)

    # --- shared-mask (split=False) checks ---
    y_np = np.asarray(y_shared)
    kept_r = y_np.real != 0.0
    kept_i = y_np.imag != 0.0
    assert np.array_equal(kept_r, kept_i), "shared mask must zero real & imag together"
    np.testing.assert_allclose(y_np.real[kept_r], x_np.real[kept_r] * scale, rtol=1e-5)
    np.testing.assert_allclose(y_np.imag[kept_i], x_np.imag[kept_i] * scale, rtol=1e-5)
    drop_frac = 1.0 - kept_r.mean()
    assert 0.15 < drop_frac < 0.45, f"drop fraction {drop_frac} far from p={p}"

    # --- planar fast path must match the complex (mask) path for the same seed ---
    np.testing.assert_allclose(np.asarray(yr_pl), y_np.real, rtol=1e-6, atol=0.0)
    np.testing.assert_allclose(np.asarray(yi_pl), y_np.imag, rtol=1e-6, atol=0.0)

    # --- split=True checks: independent masks, correct scaling ---
    ys_np = np.asarray(y_split)
    kept_sr = ys_np.real != 0.0
    kept_si = ys_np.imag != 0.0
    np.testing.assert_allclose(ys_np.real[kept_sr], x_np.real[kept_sr] * scale, rtol=1e-5)
    np.testing.assert_allclose(ys_np.imag[kept_si], x_np.imag[kept_si] * scale, rtol=1e-5)
    assert not np.array_equal(kept_sr, kept_si), "split masks should be independent"

    # --- ragged (rfft2-like) shape: exercises the no-pad fallback + partial blocks ---
    xh = x[..., :15, : W // 2 + 1]               # (2, 4, 15, 9) -> 1080 elements
    y_ragged = jax.block_until_ready(
        jax.jit(lambda v: complex_dropout(v, p, seed=seed, split=False))(xh))
    yh_np = np.asarray(y_ragged)
    xh_np = np.asarray(xh)
    kept_h = yh_np.real != 0.0
    assert np.array_equal(kept_h, yh_np.imag != 0.0)
    np.testing.assert_allclose(yh_np.real[kept_h], xh_np.real[kept_h] * scale, rtol=1e-5)

    # --- eval mode is identity ---
    y_eval = complex_dropout(x, p, seed=7, training=False)
    np.testing.assert_array_equal(np.asarray(y_eval), x_np)

    assert y_shared.shape == x.shape and y_split.shape == x.shape
    assert yr_pl.shape == x_real.shape and yi_pl.shape == x_imag.shape
    print("KERNEL_OK")
</pallas_src>

<mosaic_0001>
module attributes {stable_mosaic.version = 11 : i64} {
  func.func @kernel(%arg0: i32, %arg1: memref<1xi32, #tpu.memory_space<smem>>, %arg2: memref<2x1024xf32, #tpu.memory_space<vmem>>) attributes {dimension_semantics = [#tpu.dimension_semantics<parallel>], iteration_bounds = array<i64: 1>, scalar_prefetch = 1 : i64, scratch_operands = 0 : i64, tpu.core_type = #tpu.core_type<tc>, window_params = [{transform_indices = @transform_0, window_bounds = array<i64: 2, 1024>}]} {
    %c0 = arith.constant 0 : index
    %0 = memref.load %arg1[%c0] : memref<1xi32, #tpu.memory_space<smem>>
    %c-1640531527_i32 = arith.constant -1640531527 : i32
    %1 = arith.muli %0, %c-1640531527_i32 : i32
    %c2048_i32 = arith.constant 2048 : i32
    %2 = arith.muli %arg0, %c2048_i32 : i32
    %3 = tpu.iota {dimensions = array<i32: 0>} : vector<2x1024xi32>
    %4 = tpu.iota {dimensions = array<i32: 1>} : vector<2x1024xi32>
    %c10_i32 = arith.constant 10 : i32
    %5 = vector.broadcast %c10_i32 : i32 to vector<2x1024xi32>
    %6 = arith.shli %3, %5 : vector<2x1024xi32>
    %7 = arith.ori %6, %4 : vector<2x1024xi32>
    %8 = vector.broadcast %2 : i32 to vector<2x1024xi32>
    %9 = arith.addi %7, %8 : vector<2x1024xi32>
    %10 = vector.broadcast %1 : i32 to vector<2x1024xi32>
    %11 = arith.xori %9, %10 : vector<2x1024xi32>
    %c16_i32 = arith.constant 16 : i32
    %12 = vector.broadcast %c16_i32 : i32 to vector<2x1024xi32>
    %13 = arith.shrui %11, %12 : vector<2x1024xi32>
    %14 = arith.xori %11, %13 : vector<2x1024xi32>
    %c2146121005_i32 = arith.constant 2146121005 : i32
    %15 = vector.broadcast %c2146121005_i32 : i32 to vector<2x1024xi32>
    %16 = arith.muli %14, %15 : vector<2x1024xi32>
    %c15_i32 = arith.constant 15 : i32
    %17 = vector.broadcast %c15_i32 : i32 to vector<2x1024xi32>
    %18 = arith.shrui %16, %17 : vector<2x1024xi32>
    %19 = arith.xori %16, %18 : vector<2x1024xi32>
    %c-2073254261_i32 = arith.constant -2073254261 : i32
    %20 = vector.broadcast %c-2073254261_i32 : i32 to vector<2x1024xi32>
    %21 = arith.muli %19, %20 : vector<2x1024xi32>
    %c16_i32_0 = arith.constant 16 : i32
    %22 = vector.broadcast %c16_i32_0 : i32 to vector<2x1024xi32>
    %23 = arith.shrui %21, %22 : vector<2x1024xi32>
    %24 = arith.xori %21, %23 : vector<2x1024xi32>
    %c1288490189_i32 = arith.constant 1288490189 : i32
    %25 = vector.broadcast %c1288490189_i32 : i32 to vector<2x1024xi32>
    %26 = arith.cmpi uge, %24, %25 : vector<2x1024xi32>
    %cst = arith.constant 1.42857146 : f32
    %cst_1 = arith.constant 0.000000e+00 : f32
    %27 = vector.broadcast %cst : f32 to vector<2x1024xf32>
    %28 = vector.broadcast %cst_1 : f32 to vector<2x1024xf32>
    %29 = arith.select %26, %27, %28 : vector<2x1024xi1>, vector<2x1024xf32>
    %c0_2 = arith.constant 0 : index
    %c0_3 = arith.constant 0 : index
    %30 = vector.load %arg2[%c0_2, %c0_3] : memref<2x1024xf32, #tpu.memory_space<vmem>>, vector<2x1024xf32>
    tpu.vector_store %arg2[%c0_2, %c0_3], %29 {strides = array<i32>} : memref<2x1024xf32, #tpu.memory_space<vmem>>, vector<2x1024xf32>,
    return
  }
  func.func @transform_0(%arg0: i32, %arg1: memref<1xi32, #tpu.memory_space<smem>>) -> (i32, i32) {
    %c0_i32 = arith.constant 0 : i32
    %c0_i32_0 = arith.constant 0 : i32
    return %arg0, %c0_i32 : i32, i32
  }
}

</mosaic_0001>

<llo_original>
// kernel: custom-call
$region0: #{custom-call}
  %s0 = inlined_call_operand.hbm [shape: c64[2,4,16,16], index: 0, kind: input, shape index: {}]
  %s1 = inlined_call_operand.vmem [shape: f32[2,4,16,16], index: 1, kind: output, shape index: {}]
  $region1: #{custom-call} parent=0
    #allocation0 [shape = 's32[1]{0}', space=sflag, size = 0x4, scoped, tag = 'scoped memory for custom-call']
    %2 = vsyncpa [#allocation0], 0
    %s3 = sshll.u32 %s1, 4
    %s4 = int_to_ptr.vmem [resolvable:$true] %s3
    %6 = dma.hbm_to_vmem [thread:$0]  %s0, 2048, %s4, [#allocation0]
    %7 = dma.done [#allocation0], 2048
    %8 = vsyncpa [#allocation0], 1

// kernel: custom-call.1
$region0: #{custom-call.1}
  %s0 = inlined_call_operand.hbm [shape: c64[2,4,16,16], index: 0, kind: input, shape index: {}]
  %s1 = inlined_call_operand.vmem [shape: f32[2,4,16,16], index: 1, kind: output, shape index: {}]
  %s2 = scalar_lea.hbm %s0, 2048
  $region1: #{custom-call.1} parent=0
    #allocation0 [shape = 's32[1]{0}', space=sflag, size = 0x4, scoped, tag = 'scoped memory for custom-call.1']
    %3 = vsyncpa [#allocation0], 0
    %s4 = sshll.u32 %s1, 4
    %s5 = int_to_ptr.vmem [resolvable:$true] %s4
    %7 = dma.hbm_to_vmem [thread:$0]  %s2, 2048, %s5, [#allocation0]
    %8 = dma.done [#allocation0], 2048
    %9 = vsyncpa [#allocation0], 1

// kernel: custom-call.2
$region0: #{custom-call.2}
  %s0 = inlined_call_operand.vmem [shape: f32[2,4,16,16], index: 0, kind: input, shape index: {}]
  %s1 = inlined_call_operand.vmem [shape: f32[2,4,16,16], index: 1, kind: input, shape index: {}]
  %s2 = inlined_call_operand.hbm [shape: c64[2,4,16,16], index: 2, kind: output, shape index: {}]
  %s3 = scalar_lea.hbm %s2, 2048
  $region1: #{custom-call.2} parent=0
    #allocation0 [shape = 's32[1]{0}', space=sflag, size = 0x4, scoped, tag = 'scoped memory for custom-call.2']
    %4 = vsyncpa [#allocation0], 0
    %s5 = sshll.u32 %s0, 4
    %s6 = int_to_ptr.vmem [resolvable:$true] %s5
    %8 = dma.vmem_to_hbm [thread:$0]  %s6, 2048, %s2, [#allocation0]
    %9 = dma.done [#allocation0], 2048
    %10 = vsyncpa [#allocation0], 1
  $region2: #{custom-call.2} parent=0
    #allocation1 [shape = 's32[1]{0}', space=sflag, size = 0x4, scoped, tag = 'scoped memory for custom-call.2']
    %11 = vsyncpa [#allocation1], 0
    %s12 = sshll.u32 %s1, 4
    %s13 = int_to_ptr.vmem [resolvable:$true] %s12
    %15 = dma.vmem_to_hbm [thread:$0]  %s13, 2048, %s3, [#allocation1]
    %16 = dma.done [#allocation1], 2048
    %17 = vsyncpa [#allocation1], 1

// kernel: _lambda_.1
$region0: #{_lambda_.1}
  #allocation0 [shape = 'u32[]', space=smem, size = 0x4, offset = 0x4, fixed_abs, tag = 'smem constant byte address 0x4 - core index']
  #allocation1 [shape = 'u32[144,128]{1,0:T(1,128)}', space=vmem, size = 0x12000, scoped, tag = 'internal scratch']
  #allocation2 [shape = 's32[1]{0}', space=sflag, size = 0x4, scoped, tag = 'scoped memory for _lambda_.1']
  #allocation3 [shape = 's32[1]{0:T(128)S(6)}', space=smem, size = 0x200, scoped, tag = 'prefetched SMEM operand 0']
  %s0 = inlined_call_operand.<no memory space> [shape: s32[1], index: 0, kind: input, shape index: {}]
  %s1 = inlined_call_operand.vmem [shape: f32[2,1024], index: 1, kind: output, shape index: {}]
  %s2 = sld [smem:[#allocation0]]
  $region10: #{_lambda_.1} parent=0
    _
  %s4 = ssub.s32 1, %s2
  %s5 = scalar_select 0, %s4, %s2
  %6 = sst [smem:[#allocation3]] %s0
  %s7 = sld [smem:[#allocation3]]
  %s8 = smul.u32 %s7, 2654435769
  %s9 = smul.u32 0, 2048
  %v10 = vlaneseq
  %v11 = vshrl.u32 %v10, 7
  %v12 = vlaneseq
  %v13 = vand.u32 %v12, 127
  %v14 = vadd.s32 %v13, 128
  %v15 = vadd.s32 %v13, 256
  %v16 = vadd.s32 %v13, 384
  %v17 = vadd.s32 %v13, 512
  %v18 = vadd.s32 %v13, 640
  %v19 = vadd.s32 %v13, 768
  %v20 = vadd.s32 %v13, 896
  %v21 = vshll.u32 %v11, 10
  %v22 = vor.u32 %v21, %v13
  %v23 = vor.u32 %v21, %v14
  %v24 = vor.u32 %v21, %v15
  %v25 = vor.u32 %v21, %v16
  %v26 = vor.u32 %v21, %v17
  %v27 = vor.u32 %v21, %v18
  %v28 = vor.u32 %v21, %v19
  %v29 = vor.u32 %v21, %v20
  %v30 = vstv %s9
  %v31 = vadd.s32 %v22, %v30
  %v32 = vadd.s32 %v23, %v30
  %v33 = vadd.s32 %v24, %v30
  %v34 = vadd.s32 %v25, %v30
  %v35 = vadd.s32 %v26, %v30
  %v36 = vadd.s32 %v27, %v30
  %v37 = vadd.s32 %v28, %v30
  %v38 = vadd.s32 %v29, %v30
  %v39 = vstv %s8
  %v40 = vxor.u32 %v31, %v39
  %v41 = vxor.u32 %v32, %v39
  %v42 = vxor.u32 %v33, %v39
  %v43 = vxor.u32 %v34, %v39
  %v44 = vxor.u32 %v35, %v39
  %v45 = vxor.u32 %v36, %v39
  %v46 = vxor.u32 %v37, %v39
  %v47 = vxor.u32 %v38, %v39
  %v48 = vshrl.u32 %v40, 16
  %v49 = vshrl.u32 %v41, 16
  %v50 = vshrl.u32 %v42, 16
  %v51 = vshrl.u32 %v43, 16
  %v52 = vshrl.u32 %v44, 16
  %v53 = vshrl.u32 %v45, 16
  %v54 = vshrl.u32 %v46, 16
  %v55 = vshrl.u32 %v47, 16
  %v56 = vxor.u32 %v40, %v48
  %v57 = vxor.u32 %v41, %v49
  %v58 = vxor.u32 %v42, %v50
  %v59 = vxor.u32 %v43, %v51
  %v60 = vxor.u32 %v44, %v52
  %v61 = vxor.u32 %v45, %v53
  %v62 = vxor.u32 %v46, %v54
  %v63 = vxor.u32 %v47, %v55
  %v64 = vmul.u32 %v56, 2146121005
  %v65 = vmul.u32 %v57, 2146121005
  %v66 = vmul.u32 %v58, 2146121005
  %v67 = vmul.u32 %v59, 2146121005
  %v68 = vmul.u32 %v60, 2146121005
  %v69 = vmul.u32 %v61, 2146121005
  %v70 = vmul.u32 %v62, 2146121005
  %v71 = vmul.u32 %v63, 2146121005
  %v72 = vshrl.u32 %v64, 15
  %v73 = vshrl.u32 %v65, 15
  %v74 = vshrl.u32 %v66, 15
  %v75 = vshrl.u32 %v67, 15
  %v76 = vshrl.u32 %v68, 15
  %v77 = vshrl.u32 %v69, 15
  %v78 = vshrl.u32 %v70, 15
  %v79 = vshrl.u32 %v71, 15
  %v80 = vxor.u32 %v64, %v72
  %v81 = vxor.u32 %v65, %v73
  %v82 = vxor.u32 %v66, %v74
  %v83 = vxor.u32 %v67, %v75
  %v84 = vxor.u32 %v68, %v76
  %v85 = vxor.u32 %v69, %v77
  %v86 = vxor.u32 %v70, %v78
  %v87 = vxor.u32 %v71, %v79
  %v88 = vmul.u32 %v80, 2221713035
  %v89 = vmul.u32 %v81, 2221713035
  %v90 = vmul.u32 %v82, 2221713035
  %v91 = vmul.u32 %v83, 2221713035
  %v92 = vmul.u32 %v84, 2221713035
  %v93 = vmul.u32 %v85, 2221713035
  %v94 = vmul.u32 %v86, 2221713035
  %v95 = vmul.u32 %v87, 2221713035
  %v96 = vshrl.u32 %v88, 16
  %v97 = vshrl.u32 %v89, 16
  %v98 = vshrl.u32 %v90, 16
  %v99 = vshrl.u32 %v91, 16
  %v100 = vshrl.u32 %v92, 16
  %v101 = vshrl.u32 %v93, 16
  %v102 = vshrl.u32 %v94, 16
  %v103 = vshrl.u32 %v95, 16
  %v104 = vxor.u32 %v88, %v96
  %v105 = vxor.u32 %v89, %v97
  %v106 = vxor.u32 %v90, %v98
  %v107 = vxor.u32 %v91, %v99
  %v108 = vxor.u32 %v92, %v100
  %v109 = vxor.u32 %v93, %v101
  %v110 = vxor.u32 %v94, %v102
  %v111 = vxor.u32 %v95, %v103
  %vm112 = vcmp.ge.u32.totalorder %v104, 1288490189
  %vm113 = vcmp.ge.u32.totalorder %v105, 1288490189
  %vm114 = vcmp.ge.u32.totalorder %v106, 1288490189
  %vm115 = vcmp.ge.u32.totalorder %v107, 1288490189
  %vm116 = vcmp.ge.u32.totalorder %v108, 1288490189
  %vm117 = vcmp.ge.u32.totalorder %v109, 1288490189
  %vm118 = vcmp.ge.u32.totalorder %v110, 1288490189
  %vm119 = vcmp.ge.u32.totalorder %v111, 1288490189
  %v120 = vsel %vm112, 1.4285715, 0.0
  %v121 = vsel %vm113, 1.4285715, 0.0
  %v122 = vsel %vm114, 1.4285715, 0.0
  %v123 = vsel %vm115, 1.4285715, 0.0
  %v124 = vsel %vm116, 1.4285715, 0.0
  %v125 = vsel %vm117, 1.4285715, 0.0
  %v126 = vsel %vm118, 1.4285715, 0.0
  %v127 = vsel %vm119, 1.4285715, 0.0
  %v136 = vcombine.low %v120, %v121
  %v137 = vcombine.low %v122, %v123
  %v139 = vunpack.c.l.s4 1983009808
  %v140 = vunpack.c.0.s8 %v139
  %v141 = vlaneseq
  %v142 = vshrl.u32 %v141, 7
  %v143 = vsub.s32 %v140, %v142
  %v144 = vrot.slane %v136, %v143
  %v146 = vunpack.c.l.s4 1983009808
  %v147 = vunpack.c.0.s8 %v146
  %v148 = vlaneseq
  %v149 = vshrl.u32 %v148, 7
  %v150 = vsub.s32 %v147, %v149
  %v151 = vrot.slane %v137, %v150
  %v152 = vcombine.low %v144, %v151
  %v153 = vcombine.low %v124, %v125
  %v154 = vcombine.low %v126, %v127
  %v156 = vunpack.c.l.s4 1983009808
  %v157 = vunpack.c.0.s8 %v156
  %v158 = vlaneseq
  %v159 = vshrl.u32 %v158, 7
  %v160 = vsub.s32 %v157, %v159
  %v161 = vrot.slane %v153, %v160
  %v163 = vunpack.c.l.s4 1983009808
  %v164 = vunpack.c.0.s8 %v163
  %v165 = vlaneseq
  %v166 = vshrl.u32 %v165, 7
  %v167 = vsub.s32 %v164, %v166
  %v168 = vrot.slane %v154, %v167
  %v169 = vcombine.low %v161, %v168
  %172 = vst [vmem:[%s1] sm:$0xff] %v152
  %173 = vst [vmem:[%s1 + $0x8] sm:$0xff] %v169
  // Predicated region
  $region2: #{_lambda_.1} parent=0 // pred_check
    _
  $region3: #{_lambda_.1} parent=0 // pred_check_branch
    %175 = sbr.rel (0) target = $region5
  $region4: #{_lambda_.1} parent=0 // pred_region
    _
  $region5: #{_lambda_.1} parent=0 // pred_fallthru
    _
  // Predicated region
  $region6: #{_lambda_.1} parent=0 // pred_check
    _
  $region7: #{_lambda_.1} parent=0 // pred_check_branch
    %177 = sbr.rel (0) target = $region9
  $region8: #{_lambda_.1} parent=0 // pred_region
    _
  $region9: #{_lambda_.1} parent=0 // pred_fallthru
    _

</llo_original>
